<compile_context>
chip_gen: v5e
topology: v5e:2x2
jax: 0.10.0
libtpu: 0.0.40
codegen_flags: <defaults>
</compile_context>

<pallas_src>
import functools
import math

import jax
import jax.numpy as jnp
import numpy as np
from jax.experimental import pallas as pl
from jax.experimental.pallas import tpu as pltpu


def _round_up(x, m):
    return ((x + m - 1) // m) * m


def _sublane_multiple(dtype):
    # Second-minor tile size: 8 for 4-byte, 16 for 2-byte, 32 for 1-byte dtypes.
    return max(8, 32 // jnp.dtype(dtype).itemsize)


def _focal_loss_kernel(pred_ref, label_ref, out_ref, *,
                       alpha, gamma, eps, wscale, ignore_label,
                       from_logits, rows_valid, rows_per_chunk, need_row_mask):
    """One (sample, chunk) grid step: elementwise focal loss + partial sums."""
    pred = pred_ref[...].astype(jnp.float32)      # (1, TP, 128)
    label = label_ref[...].astype(jnp.float32)

    one_hot = label > 0.5
    valid = label != float(ignore_label)          # sample_weight (bool)
    if need_row_mask:
        # Last chunk along the row axis may extend past the real data: mask
        # those rows so out-of-bounds garbage contributes exactly nothing.
        c = pl.program_id(1)
        row = jax.lax.broadcasted_iota(jnp.int32, pred.shape, dimension=1)
        valid = jnp.logical_and(valid, row < (rows_valid - c * rows_per_chunk))

    if not from_logits:
        pred = jax.nn.sigmoid(pred)

    # weight*scale folded into the per-class alpha constants.  NOTE: no `* sw`
    # here -- invalid elements contribute exactly 0 because the `valid` select
    # below forces pt == 1 => log(min(pt+eps, 1)) == 0 and beta == 0.
    a = jnp.where(one_hot, alpha * wscale, (1.0 - alpha) * wscale)
    pt = jnp.where(valid, 1.0 - jnp.abs(label - pred), 1.0)
    one_m_pt = 1.0 - pt

    g = float(gamma)
    if g.is_integer() and 0.0 <= g <= 8.0:
        # Integer gamma (default 2): repeated VPU multiplies instead of
        # jnp.power == exp(g*log(x)) (2 EUP transcendentals per element).
        gi = int(g)
        beta = jnp.ones_like(one_m_pt) if gi == 0 else one_m_pt
        for _ in range(max(gi - 1, 0)):
            beta = beta * one_m_pt
    else:
        beta = jnp.power(one_m_pt, gamma)

    loss = -a * beta * jnp.log(jnp.minimum(pt + eps, 1.0))

    loss_sum = jnp.sum(loss)
    tsum = jnp.sum(valid.astype(jnp.float32))

    # Single lane-dense (8,128) output tile per step:
    #   sublane 0 -> partial loss sum, sublanes 1..7 -> partial tsum.
    ridx = jax.lax.broadcasted_iota(jnp.int32, out_ref.shape, dimension=2)
    out_ref[...] = jnp.where(ridx == 0, loss_sum, tsum)


def focal_loss(pred, label, *,
               alpha=0.25, gamma=2.0, from_logits=False, weight=1.0,
               scale=1.0, ignore_label=-1, eps=1e-9, size_average=True,
               chunk_rows=4096):
    """Returns a per-batch loss of shape (N,), matching the PyTorch module."""
    assert pred.shape == label.shape
    N = pred.shape[0]
    L = int(math.prod(pred.shape[1:]))

    pred_f = pred.reshape(N, L)        # native dtype; free reshape, no HBM copy
    label_f = label.reshape(N, L)

    pad = (-L) % 128
    if pad:
        # TODO(synk): this fallback costs a full HBM round trip of both
        # tensors; a zero-copy (.,128)-tiled view of non-lane-aligned rows is
        # not expressible with BlockSpec, so arrange lane-aligned C*H*W
        # upstream (or fuse the pad into the producer) to stay on the
        # zero-copy fast path.  Padded labels use ignore_label -> exactly
        # zero contribution.
        pred_f = jnp.pad(pred_f, ((0, 0), (0, pad)))
        label_f = jnp.pad(label_f, ((0, 0), (0, pad)),
                          constant_values=float(ignore_label))
    P = (L + pad) // 128
    pred_f = pred_f.reshape(N, P, 128)
    label_f = label_f.reshape(N, P, 128)

    # Row-chunk size TP: multiple of the sublane tile (8 f32 / 16 bf16 /
    # 32 int8), capped by chunk_rows (2 MiB f32 per input buffer at 4096 ->
    # 8 MiB of double-buffered inputs, safe on v7x's 64 MiB VMEM), and shrunk
    # if needed so N*NC >= ~8 grid steps exist (keeps both v7x TensorCores
    # busy and gives the DMA pipeline a next step to prefetch at N=1-2).
    req = max(_sublane_multiple(pred_f.dtype), _sublane_multiple(label_f.dtype))
    chunk_rows_r = max(req, _round_up(int(chunk_rows), req))
    target_nc = max(2, pl.cdiv(8, max(N, 1)))
    tp = min(chunk_rows_r, _round_up(pl.cdiv(P, target_nc), req))
    if tp >= P:
        TP = P                # single full-extent chunk (any P is legal here)
    else:
        TP = tp               # multiple of `req`; ragged last chunk is masked
    NC = pl.cdiv(P, TP)
    need_row_mask = (P % TP) != 0

    kernel = functools.partial(
        _focal_loss_kernel,
        alpha=float(alpha), gamma=float(gamma), eps=float(eps),
        wscale=float(weight) * float(scale),
        ignore_label=ignore_label, from_logits=bool(from_logits),
        rows_valid=P, rows_per_chunk=TP, need_row_mask=need_row_mask)

    elems = N * P * 128
    in_bytes = (jnp.dtype(pred_f.dtype).itemsize
                + jnp.dtype(label_f.dtype).itemsize)
    cost = pl.CostEstimate(
        flops=20 * elems,
        transcendentals=3 * elems,
        bytes_accessed=elems * in_bytes + N * NC * 8 * 128 * 4)

    part = pl.pallas_call(
        kernel,
        out_shape=jax.ShapeDtypeStruct((N, NC, 8, 128), jnp.float32),
        grid=(N, NC),
        in_specs=[
            pl.BlockSpec((1, TP, 128), lambda b, c: (b, c, 0)),
            pl.BlockSpec((1, TP, 128), lambda b, c: (b, c, 0)),
        ],
        out_specs=pl.BlockSpec((1, 1, 8, 128), lambda b, c: (b, c, 0, 0)),
        compiler_params=pltpu.CompilerParams(
            dimension_semantics=("parallel", "parallel"),
            vmem_limit_bytes=32 * 1024 * 1024),
        cost_estimate=cost,
    )(pred_f, label_f)

    loss_sum = jnp.sum(part[:, :, 0, 0], axis=1)   # weight*scale folded in
    if size_average:
        tsum = jnp.sum(part[:, :, 1, 0], axis=1)
        return loss_sum / (tsum + eps)
    return loss_sum


def _focal_loss_ref(pred, label, *,
                    alpha=0.25, gamma=2.0, from_logits=False, weight=1.0,
                    scale=1.0, ignore_label=-1, eps=1e-9, size_average=True):
    """Pure-JAX reference mirroring the PyTorch forward."""
    pred = pred.astype(jnp.float32)
    label = label.astype(jnp.float32)
    one_hot = label > 0.5
    sw_bool = label != ignore_label
    sw = sw_bool.astype(jnp.float32)
    p = pred if from_logits else jax.nn.sigmoid(pred)
    a = jnp.where(one_hot, alpha * sw, (1.0 - alpha) * sw)
    pt = jnp.where(sw_bool, 1.0 - jnp.abs(label - p), jnp.ones_like(p))
    beta = jnp.power(1.0 - pt, gamma)
    loss = -a * beta * jnp.log(jnp.minimum(pt + eps, 1.0))
    loss = weight * (loss * sw)
    axes = tuple(range(1, pred.ndim))
    if size_average:
        tsum = jnp.sum(sw, axis=axes)
        loss = jnp.sum(loss, axis=axes) / (tsum + eps)
    else:
        loss = jnp.sum(loss, axis=axes)
    return scale * loss


if __name__ == "__main__":
    key = jax.random.PRNGKey(0)
    k1, k2, k3, k4, k5, k6 = jax.random.split(key, 6)

    def _check(out, ref, rtol=1e-5, atol=1e-6):
        np.testing.assert_allclose(np.asarray(out), np.asarray(ref),
                                   rtol=rtol, atol=atol)

    # --- Test 1: default config, lane-aligned shape (zero-copy fast path) ---
    N, C, H, W = 2, 4, 16, 16
    pred = jax.random.normal(k1, (N, C, H, W), dtype=jnp.float32)
    label = jax.random.bernoulli(k2, 0.5, (N, C, H, W)).astype(jnp.float32)
    ignore_mask = jax.random.bernoulli(k3, 0.1, (N, C, H, W))
    label = jnp.where(ignore_mask, -1.0, label)
    _check(jax.block_until_ready(focal_loss(pred, label)),
           _focal_loss_ref(pred, label))

    # --- Test 2: multi-chunk + ragged-row-mask path --------------------------
    N2, C2, H2, W2 = 2, 4, 16, 18          # L = 1152 -> P = 9 rows
    pred2 = jax.random.normal(k4, (N2, C2, H2, W2), dtype=jnp.float32)
    label2 = jax.random.bernoulli(k5, 0.5, (N2, C2, H2, W2)).astype(jnp.float32)
    label2 = jnp.where(jax.random.bernoulli(k6, 0.1, label2.shape), -1.0, label2)
    _check(jax.block_until_ready(focal_loss(pred2, label2, chunk_rows=8)),
           _focal_loss_ref(pred2, label2))

    # --- Test 3: unaligned L (pad fallback), from_logits, gamma=1.7, no avg --
    pred3 = jax.random.uniform(k4, (2, 3, 10, 13), dtype=jnp.float32,
                               minval=0.01, maxval=0.99)   # probabilities
    label3 = jax.random.bernoulli(k5, 0.5, (2, 3, 10, 13)).astype(jnp.float32)
    kwargs3 = dict(from_logits=True, size_average=False, gamma=1.7,
                   weight=0.5, scale=2.0)
    _check(jax.block_until_ready(focal_loss(pred3, label3, **kwargs3)),
           _focal_loss_ref(pred3, label3, **kwargs3))

    # --- Test 4: bf16 pred (narrow input, TP rounded to 16 sublanes) ---------
    pred4 = jax.random.normal(k1, (2, 4, 32, 32), dtype=jnp.bfloat16)
    label4 = jax.random.bernoulli(k2, 0.5, (2, 4, 32, 32)).astype(jnp.float32)
    label4 = jnp.where(jax.random.bernoulli(k3, 0.1, label4.shape), -1.0, label4)
    _check(jax.block_until_ready(focal_loss(pred4, label4)),
           _focal_loss_ref(pred4, label4))

    # --- Test 5: N=1, larger spatial -> chunk split for >=8 grid steps -------
    pred5 = jax.random.normal(k4, (1, 4, 128, 128), dtype=jnp.float32)
    label5 = jax.random.bernoulli(k5, 0.5, (1, 4, 128, 128)).astype(jnp.float32)
    label5 = jnp.where(jax.random.bernoulli(k6, 0.1, label5.shape), -1.0, label5)
    _check(jax.block_until_ready(focal_loss(pred5, label5)),
           _focal_loss_ref(pred5, label5))

    print("KERNEL_OK")
</pallas_src>

<mosaic_0001>
module attributes {stable_mosaic.version = 11 : i64} {
  func.func @_focal_loss_kernel(%arg0: i32, %arg1: i32, %arg2: memref<1x8x128xf32, #tpu.memory_space<vmem>>, %arg3: memref<1x8x128xf32, #tpu.memory_space<vmem>>, %arg4: memref<1x1x8x128xf32, #tpu.memory_space<vmem>>) attributes {dimension_semantics = [#tpu.dimension_semantics<parallel>, #tpu.dimension_semantics<parallel>], iteration_bounds = array<i64: 2, 1>, scalar_prefetch = 0 : i64, scratch_operands = 0 : i64, tpu.core_type = #tpu.core_type<tc>, window_params = [{transform_indices = @transform_0, window_bounds = array<i64: 1, 8, 128>}, {transform_indices = @transform_1, window_bounds = array<i64: 1, 8, 128>}, {transform_indices = @transform_2, window_bounds = array<i64: 1, 1, 8, 128>}]} {
    %c0 = arith.constant 0 : index
    %c0_0 = arith.constant 0 : index
    %c0_1 = arith.constant 0 : index
    %0 = vector.load %arg2[%c0, %c0_0, %c0_1] : memref<1x8x128xf32, #tpu.memory_space<vmem>>, vector<1x8x128xf32>
    %c0_2 = arith.constant 0 : index
    %c0_3 = arith.constant 0 : index
    %c0_4 = arith.constant 0 : index
    %1 = vector.load %arg3[%c0_2, %c0_3, %c0_4] : memref<1x8x128xf32, #tpu.memory_space<vmem>>, vector<1x8x128xf32>
    %cst = arith.constant 5.000000e-01 : f32
    %2 = vector.broadcast %cst : f32 to vector<1x8x128xf32>
    %3 = arith.cmpf ogt, %1, %2 : vector<1x8x128xf32>
    %cst_5 = arith.constant -1.000000e+00 : f32
    %4 = vector.broadcast %cst_5 : f32 to vector<1x8x128xf32>
    %5 = arith.cmpf one, %1, %4 : vector<1x8x128xf32>
    %6 = arith.negf %0 : vector<1x8x128xf32>
    %7 = math.exp %6 : vector<1x8x128xf32>
    %cst_6 = arith.constant 1.000000e+00 : f32
    %8 = vector.broadcast %cst_6 : f32 to vector<1x8x128xf32>
    %9 = arith.addf %8, %7 : vector<1x8x128xf32>
    %10 = arith.divf %8, %9 : vector<1x8x128xf32>
    %cst_7 = arith.constant 2.500000e-01 : f32
    %cst_8 = arith.constant 7.500000e-01 : f32
    %11 = vector.broadcast %cst_7 : f32 to vector<1x8x128xf32>
    %12 = vector.broadcast %cst_8 : f32 to vector<1x8x128xf32>
    %13 = arith.select %3, %11, %12 : vector<1x8x128xi1>, vector<1x8x128xf32>
    %14 = arith.subf %1, %10 : vector<1x8x128xf32>
    %15 = math.absf %14 : vector<1x8x128xf32>
    %cst_9 = arith.constant 1.000000e+00 : f32
    %16 = vector.broadcast %cst_9 : f32 to vector<1x8x128xf32>
    %17 = arith.subf %16, %15 : vector<1x8x128xf32>
    %cst_10 = arith.constant 1.000000e+00 : f32
    %18 = vector.broadcast %cst_10 : f32 to vector<1x8x128xf32>
    %19 = arith.select %5, %17, %18 : vector<1x8x128xi1>, vector<1x8x128xf32>
    %cst_11 = arith.constant 1.000000e+00 : f32
    %20 = vector.broadcast %cst_11 : f32 to vector<1x8x128xf32>
    %21 = arith.subf %20, %19 : vector<1x8x128xf32>
    %22 = arith.mulf %21, %21 : vector<1x8x128xf32>
    %cst_12 = arith.constant 0.000000e+00 : f32
    %23 = vector.broadcast %cst_12 : f32 to vector<1x8x128xf32>
    %24 = arith.subf %23, %13 : vector<1x8x128xf32>
    %25 = arith.mulf %24, %22 : vector<1x8x128xf32>
    %cst_13 = arith.constant 9.99999971E-10 : f32
    %26 = vector.broadcast %cst_13 : f32 to vector<1x8x128xf32>
    %27 = arith.addf %19, %26 : vector<1x8x128xf32>
    %cst_14 = arith.constant 1.000000e+00 : f32
    %28 = vector.broadcast %cst_14 : f32 to vector<1x8x128xf32>
    %29 = arith.minimumf %27, %28 : vector<1x8x128xf32>
    %30 = math.log %29 : vector<1x8x128xf32>
    %31 = arith.mulf %25, %30 : vector<1x8x128xf32>
    %32 = vector.shape_cast %31 : vector<1x8x128xf32> to vector<1x1x8x128xf32>
    %cst_15 = arith.constant dense<0.000000e+00> : vector<1xf32>
    %33 = vector.multi_reduction <add>, %32, %cst_15 [1, 2, 3] : vector<1x1x8x128xf32> to vector<1xf32>
    %34 = vector.shape_cast %33 : vector<1xf32> to vector<1x1x1x1xf32>
    %35 = vector.extract %34[0, 0, 0, 0] : f32 from vector<1x1x1x1xf32>
    %36 = arith.extui %5 : vector<1x8x128xi1> to vector<1x8x128xi32>
    %37 = arith.sitofp %36 : vector<1x8x128xi32> to vector<1x8x128xf32>
    %38 = vector.shape_cast %37 : vector<1x8x128xf32> to vector<1x1x8x128xf32>
    %cst_16 = arith.constant dense<0.000000e+00> : vector<1xf32>
    %39 = vector.multi_reduction <add>, %38, %cst_16 [1, 2, 3] : vector<1x1x8x128xf32> to vector<1xf32>
    %40 = vector.shape_cast %39 : vector<1xf32> to vector<1x1x1x1xf32>
    %41 = vector.extract %40[0, 0, 0, 0] : f32 from vector<1x1x1x1xf32>
    %42 = tpu.iota {dimensions = array<i32: 2>} : vector<1x1x8x128xi32>
    %c0_i32 = arith.constant 0 : i32
    %43 = vector.broadcast %c0_i32 : i32 to vector<1x1x8x128xi32>
    %44 = arith.cmpi eq, %42, %43 : vector<1x1x8x128xi32>
    %45 = vector.broadcast %35 : f32 to vector<1x1x8x128xf32>
    %46 = vector.broadcast %41 : f32 to vector<1x1x8x128xf32>
    %47 = arith.select %44, %45, %46 : vector<1x1x8x128xi1>, vector<1x1x8x128xf32>
    %c0_17 = arith.constant 0 : index
    %c0_18 = arith.constant 0 : index
    %c0_19 = arith.constant 0 : index
    %c0_20 = arith.constant 0 : index
    %48 = vector.load %arg4[%c0_17, %c0_18, %c0_19, %c0_20] : memref<1x1x8x128xf32, #tpu.memory_space<vmem>>, vector<1x1x8x128xf32>
    tpu.vector_store %arg4[%c0_17, %c0_18, %c0_19, %c0_20], %47 {strides = array<i32>} : memref<1x1x8x128xf32, #tpu.memory_space<vmem>>, vector<1x1x8x128xf32>,
    return
  }
  func.func @transform_0(%arg0: i32, %arg1: i32) -> (i32, i32, i32) {
    %c0_i32 = arith.constant 0 : i32
    %c0_i32_0 = arith.constant 0 : i32
    return %arg0, %arg1, %c0_i32 : i32, i32, i32
  }
  func.func @transform_1(%arg0: i32, %arg1: i32) -> (i32, i32, i32) {
    %c0_i32 = arith.constant 0 : i32
    %c0_i32_0 = arith.constant 0 : i32
    return %arg0, %arg1, %c0_i32 : i32, i32, i32
  }
  func.func @transform_2(%arg0: i32, %arg1: i32) -> (i32, i32, i32, i32) {
    %c0_i32 = arith.constant 0 : i32
    %c0_i32_0 = arith.constant 0 : i32
    %c0_i32_1 = arith.constant 0 : i32
    return %arg0, %arg1, %c0_i32, %c0_i32_0 : i32, i32, i32, i32
  }
}

</mosaic_0001>

<llo_original>
// kernel: tpu_custom_call.1
$region0: #{tpu_custom_call.1}
  #allocation0 [shape = 'u32[]', space=smem, size = 0x4, offset = 0x4, fixed_abs, tag = 'smem constant byte address 0x4 - core index']
  #allocation1 [shape = 'u32[72,128]{1,0:T(1,128)}', space=vmem, size = 0x9000, scoped, tag = 'internal scratch']
  %s0 = inlined_call_operand.hbm [shape: f32[2,8,128], index: 0, kind: input, shape index: {}]
  %s1 = inlined_call_operand.hbm [shape: f32[2,8,128], index: 1, kind: input, shape index: {}]
  %s2 = inlined_call_operand.hbm [shape: f32[2,1,8,128], index: 2, kind: output, shape index: {}]
  %s3 = sld [smem:[#allocation0]]
  $region49: #{tpu_custom_call.1} parent=0
    _
  %s5 = ssub.s32 1, %s3
  %s6 = scalar_select 0, %s5, %s3
  $region1: #{tpu_custom_call.1} parent=0
    #allocation2 [shape = 'u8[8192]{0}', space=vmem, size = 0x2000, scoped, tag = 'input window, operand 0']
    #allocation3 [shape = 's32[2]{0}', space=sflag, size = 0x8, scoped, tag = 'scoped memory for tpu_custom_call.1']
    #allocation4 [shape = 's32[2]{0}', space=sflag, size = 0x8, scoped, tag = 'scoped memory for tpu_custom_call.1']
    #allocation5 [shape = 'u8[8192]{0}', space=vmem, size = 0x2000, scoped, tag = 'input window, operand 1']
    #allocation6 [shape = 's32[2]{0}', space=sflag, size = 0x8, scoped, tag = 'scoped memory for tpu_custom_call.1']
    #allocation7 [shape = 'u8[8192]{0}', space=vmem, size = 0x2000, scoped, tag = 'output window, operand 0']
    %7 = vsyncpa [#allocation3], 0
    %s8 = scalar_lea.sflag [#allocation3], 1
    %9 = vsyncpa %s8, 0
    %10 = vsyncpa [#allocation6], 0
    %s11 = scalar_lea.sflag [#allocation6], 1
    %12 = vsyncpa %s11, 0
    %13 = vsyncpa [#allocation4], 0
    %s14 = scalar_lea.sflag [#allocation4], 1
    %15 = vsyncpa %s14, 0
    loop: start=0, step=1, limit=4
    $region2: #{tpu_custom_call.1} parent=1 // loop_pre_header
      _
    $region3: #{tpu_custom_call.1} parent=1 // loop_header
      %s17 = sphi 0, %s21
      %p18 = scmp.ge.s32.totalorder %s17, 4
      %s24 = sphi 0, %s36
      %s25 = sphi 0, %s32
      %s26 = sphi 0, %s24
      %s27 = sphi 0, %s25
      %s28 = sphi 0, %s26
      %s29 = sphi 0, %s27
      %s41 = sphi 0, %s43
      %s44 = sphi 0, %s41
      %s45 = sphi 0, %s44
      %s61 = sphi 0, %s45
      %s69 = sphi 0, %s71
      %s72 = sphi 0, %s69
      %s73 = sphi 0, %s72
      %s89 = sphi 0, %s73
      %s97 = sphi 0, %s99
      %s100 = sphi 0, %s97
      %s101 = sphi 0, %s100
      %s117 = sphi 0, %s101
    $region4: #{tpu_custom_call.1} parent=1 // loop_header_branch
      %20 = sbr.rel (%p18) target = $region8
    $region5: #{tpu_custom_call.1} parent=1 // loop_body
      %s22 = ssub.s32 %s17, 1
      %s23 = ssub.s32 %s17, 2
      %s30 = sadd.s32 1, %s25
      %p31 = scmp.ge.s32.totalorder %s30, 1
      %s32 = scalar_select %p31, 0, %s30
      %s33 = sadd.s32 1, %s24
      %s34 = scalar_select %p31, %s33, %s24
      %p35 = scmp.ge.s32.totalorder %s34, 2
      %s36 = scalar_select %p35, 0, %s34
      %s37 = ssub.s32 %s24, %s36
      %s38 = ssub.s32 %s25, %s32
      %s39 = sor.u32 %s37, %s38
      %p40 = scmp.eq.s32.totalorder %s39, 0
      %s42 = sadd.s32 %s41, 1
      %s43 = scalar_select %p40, %s41, %s42
      %p46 = pneg %p40
      %p47 = scmp.eq.s32.totalorder %s17, 1
      %p48 = por %p46, %p47
      %p49 = scmp.ne.s32.totalorder %s41, %s44
      %p50 = scmp.eq.s32.totalorder %s17, 0
      %p51 = por %p49, %p50
      %p52 = scmp.ne.s32.totalorder %s41, %s44
      %p53 = scmp.eq.s32.totalorder %s22, 1
      %p54 = por %p52, %p53
      %p55 = scmp.ne.s32.totalorder %s44, %s45
      %p56 = scmp.eq.s32.totalorder %s22, 0
      %p57 = por %p55, %p56
      %p58 = scmp.ne.s32.totalorder %s44, %s45
      %p59 = scmp.eq.s32.totalorder %s23, 1
      %p60 = por %p58, %p59
      %p62 = scmp.ne.s32.totalorder %s45, %s61
      %p63 = scmp.eq.s32.totalorder %s23, 0
      %p64 = por %p62, %p63
      %s65 = ssub.s32 %s24, %s36
      %s66 = ssub.s32 %s25, %s32
      %s67 = sor.u32 %s65, %s66
      %p68 = scmp.eq.s32.totalorder %s67, 0
      %s70 = sadd.s32 %s69, 1
      %s71 = scalar_select %p68, %s69, %s70
      %p74 = pneg %p68
      %p75 = scmp.eq.s32.totalorder %s17, 1
      %p76 = por %p74, %p75
      %p77 = scmp.ne.s32.totalorder %s69, %s72
      %p78 = scmp.eq.s32.totalorder %s17, 0
      %p79 = por %p77, %p78
      %p80 = scmp.ne.s32.totalorder %s69, %s72
      %p81 = scmp.eq.s32.totalorder %s22, 1
      %p82 = por %p80, %p81
      %p83 = scmp.ne.s32.totalorder %s72, %s73
      %p84 = scmp.eq.s32.totalorder %s22, 0
      %p85 = por %p83, %p84
      %p86 = scmp.ne.s32.totalorder %s72, %s73
      %p87 = scmp.eq.s32.totalorder %s23, 1
      %p88 = por %p86, %p87
      %p90 = scmp.ne.s32.totalorder %s73, %s89
      %p91 = scmp.eq.s32.totalorder %s23, 0
      %p92 = por %p90, %p91
      %s93 = ssub.s32 %s24, %s36
      %s94 = ssub.s32 %s25, %s32
      %s95 = sor.u32 %s93, %s94
      %p96 = scmp.eq.s32.totalorder %s95, 0
      %s98 = sadd.s32 %s97, 1
      %s99 = scalar_select %p96, %s97, %s98
      %p102 = pneg %p96
      %p103 = scmp.eq.s32.totalorder %s17, 1
      %p104 = por %p102, %p103
      %p105 = scmp.ne.s32.totalorder %s97, %s100
      %p106 = scmp.eq.s32.totalorder %s17, 0
      %p107 = por %p105, %p106
      %p108 = scmp.ne.s32.totalorder %s97, %s100
      %p109 = scmp.eq.s32.totalorder %s22, 1
      %p110 = por %p108, %p109
      %p111 = scmp.ne.s32.totalorder %s100, %s101
      %p112 = scmp.eq.s32.totalorder %s22, 0
      %p113 = por %p111, %p112
      %p114 = scmp.ne.s32.totalorder %s100, %s101
      %p115 = scmp.eq.s32.totalorder %s23, 1
      %p116 = por %p114, %p115
      %p118 = scmp.ne.s32.totalorder %s101, %s117
      %p119 = scmp.eq.s32.totalorder %s23, 0
      %p120 = por %p118, %p119
      %p121 = scmp.le.s32.totalorder 1, %s17
      %p122 = scmp.lt.s32.totalorder %s17, 3
      %p123 = pnand %p121, %p122
      %p124 = pneg %p123
      // Predicated region
      $region9: #{tpu_custom_call.1} parent=5 // pred_check
        _
      $region10: #{tpu_custom_call.1} parent=5 // pred_check_branch
        %126 = sbr.rel (%p123) target = $region12
      $region11: #{tpu_custom_call.1} parent=5 // pred_region
        %s127 = ssub.s32 %s17, 1
      $region12: #{tpu_custom_call.1} parent=5 // pred_fallthru
        _
      %p128 = scmp.lt.s32.totalorder %s17, 2
      // Predicated region
      $region13: #{tpu_custom_call.1} parent=5 // pred_check
        %p129 = pneg %p128
      $region14: #{tpu_custom_call.1} parent=5 // pred_check_branch
        %131 = sbr.rel (%p129) target = $region16
      $region15: #{tpu_custom_call.1} parent=5 // pred_region
        // Predicated region
        $region17: #{tpu_custom_call.1} parent=15 // pred_check
          %p132 = pneg %p51
        $region18: #{tpu_custom_call.1} parent=15 // pred_check_branch
          %134 = sbr.rel (%p132) target = $region20
        $region19: #{tpu_custom_call.1} parent=15 // pred_region
          %s135 = sand.u32 %s41, 1
          %s136 = scalar_lea.sflag [#allocation3], %s135
          %s137 = sand.u32 %s41, 1
          %s138 = smul.addr %s137, 8
          %s139 = scalar_lea.vmem [#allocation2], %s138
          %141 = vsyncadd %s136, 0
          %s142 = sadd.s32 %s25, %s24
          %s143 = smul.addr %s142, 8
          %s144 = scalar_lea.hbm %s0, %s143
          %s146 = sshll.u32 %s144, 4
          %s147 = int_to_ptr.hbm [resolvable:$true] %s146
          %s148 = sshll.u32 %s139, 4
          %s149 = int_to_ptr.vmem [resolvable:$true] %s148
          %151 = dma.hbm_to_vmem [thread:$0]  %s147, 128, %s149, %s136
        $region20: #{tpu_custom_call.1} parent=15 // pred_fallthru
          _
        // Predicated region
        $region21: #{tpu_custom_call.1} parent=15 // pred_check
          %p152 = pneg %p79
        $region22: #{tpu_custom_call.1} parent=15 // pred_check_branch
          %154 = sbr.rel (%p152) target = $region24
        $region23: #{tpu_custom_call.1} parent=15 // pred_region
          %s155 = sand.u32 %s69, 1
          %s156 = scalar_lea.sflag [#allocation6], %s155
          %s157 = sand.u32 %s69, 1
          %s158 = smul.addr %s157, 8
          %s159 = scalar_lea.vmem [#allocation5], %s158
          %161 = vsyncadd %s156, 0
          %s162 = sadd.s32 %s25, %s24
          %s163 = smul.addr %s162, 8
          %s164 = scalar_lea.hbm %s1, %s163
          %s166 = sshll.u32 %s164, 4
          %s167 = int_to_ptr.hbm [resolvable:$true] %s166
          %s168 = sshll.u32 %s159, 4
          %s169 = int_to_ptr.vmem [resolvable:$true] %s168
          %171 = dma.hbm_to_vmem [thread:$0]  %s167, 128, %s169, %s156
        $region24: #{tpu_custom_call.1} parent=15 // pred_fallthru
          _
      $region16: #{tpu_custom_call.1} parent=5 // pred_fallthru
        _
      %p172 = scmp.le.s32.totalorder 1, %s17
      %p173 = scmp.lt.s32.totalorder %s17, 3
      %p174 = pnand %p172, %p173
      %p175 = pneg %p174
      // Predicated region
      $region25: #{tpu_custom_call.1} parent=5 // pred_check
        _
      $region26: #{tpu_custom_call.1} parent=5 // pred_check_branch
        %177 = sbr.rel (%p174) target = $region28
      $region27: #{tpu_custom_call.1} parent=5 // pred_region
        %s178 = ssub.s32 %s17, 1
        %s179 = sand.u32 %s44, 1
        %s180 = scalar_lea.sflag [#allocation3], %s179
        %s181 = sand.u32 %s44, 1
        %s182 = smul.addr %s181, 8
        %s183 = scalar_lea.vmem [#allocation2], %s182
        // Predicated region
        $region29: #{tpu_custom_call.1} parent=27 // pred_check
          %p184 = pneg %p57
        $region30: #{tpu_custom_call.1} parent=27 // pred_check_branch
          %186 = sbr.rel (%p184) target = $region32
        $region31: #{tpu_custom_call.1} parent=27 // pred_region
          %188 = dma.done %s180, 128
        $region32: #{tpu_custom_call.1} parent=27 // pred_fallthru
          _
        %s189 = sand.u32 %s72, 1
        %s190 = scalar_lea.sflag [#allocation6], %s189
        %s191 = sand.u32 %s72, 1
        %s192 = smul.addr %s191, 8
        %s193 = scalar_lea.vmem [#allocation5], %s192
        // Predicated region
        $region33: #{tpu_custom_call.1} parent=27 // pred_check
          %p194 = pneg %p85
        $region34: #{tpu_custom_call.1} parent=27 // pred_check_branch
          %196 = sbr.rel (%p194) target = $region36
        $region35: #{tpu_custom_call.1} parent=27 // pred_region
          %198 = dma.done %s190, 128
        $region36: #{tpu_custom_call.1} parent=27 // pred_fallthru
          _
        %s199 = sand.u32 %s44, 1
        %s200 = scalar_lea.sflag [#allocation3], %s199
        %s201 = sand.u32 %s44, 1
        %s202 = smul.addr %s201, 8
        %s203 = scalar_lea.vmem [#allocation2], %s202
        %p204 = pneg %p57
        %p205 = pneg %p54
        %s206 = sand.u32 %s72, 1
        %s207 = scalar_lea.sflag [#allocation6], %s206
        %s208 = sand.u32 %s72, 1
        %s209 = smul.addr %s208, 8
        %s210 = scalar_lea.vmem [#allocation5], %s209
        %p211 = pneg %p85
        %p212 = pneg %p82
        %p213 = pneg %p113
        %p214 = pneg %p110
        %s215 = sand.u32 %s100, 1
        %s216 = scalar_lea.sflag [#allocation4], %s215
        %s217 = sand.u32 %s100, 1
        %s218 = smul.addr %s217, 8
        %s219 = scalar_lea.vmem [#allocation7], %s218
        %v220 = vld [vmem:[%s183] sm:$0xff]
        %v221 = vld [vmem:[%s193] sm:$0xff]
        %vm222 = vcmp.gt.f32.partialorder %v221, 0.5
        %vm223 = vcmp.ne.f32.partialorder %v221, -1.0
        %v224 = vxor.u32 %v220, 2147483648
        %v225 = vmul.f32 %v224, 1.442695
        %v226 = vpow.pop %v225
        %v227 = vadd.f32 %v226, 1.0
        %v228 = vrcp.pop %v227
        %v229 = vmul.f32 %v227, %v228
        %v230 = vsub.f32 1.0, %v229
        %v231 = vmul.f32 %v228, %v230
        %v232 = vadd.f32 %v228, %v231
        %vm233 = vweird.f32 %v227
        %vm234 = vweird.f32 %v228
        %vm235 = vmor %vm233, %vm234
        %v236 = vsel %vm235, %v228, %v232
        %v237 = vand.u32 2147483647, %v227
        %vm238 = vcmp.eq.f32.partialorder %v237, 8.507059e+37
        %v239 = vand.u32 %v227, 2147483648
        %v240 = vor.u32 1.1754944e-38, %v239
        %v241 = vsel %vm238, %v240, %v236
        %v242 = vmul.f32 1.0, %v241
        %v243 = vsel %vm222, 0.25, 0.75
        %v244 = vsub.f32 %v221, %v242
        %v245 = vand.u32 2147483647, %v244
        %v246 = vsub.f32 1.0, %v245
        %v247 = vsel %vm223, %v246, 1.0
        %v248 = vsub.f32 1.0, %v247
        %v249 = vmul.f32 %v248, %v248
        %v250 = vsub.f32 0.0, %v243
        %v251 = vmul.f32 %v250, %v249
        %v252 = vadd.f32 %v247, 1e-09
        %v253 = vmin.f32 %v252, 1.0
        %v254 = vlog2.pop %v253
        %v255 = vmul.f32 %v254, 0.6931472
        %v256 = vmul.f32 %v251, %v255
        %257 = vadd.xlane.f32.xlu0 %v256
        %v258 = vpop.xlane.xlu0 %257
        %v259 = vrot.slane %v258, 4
        %v260 = vadd.f32 %v258, %v259
        %v261 = vrot.slane %v260, 2
        %v262 = vadd.f32 %v260, %v261
        %v263 = vrot.slane %v262, 1
        %v264 = vadd.f32 %v262, %v263
        %s265 = vtos %v264
        %v266 = vsel %vm223, 1, 0
        %v267 = vcvt.s32.f32 %v266
        %268 = vadd.xlane.f32.xlu0 %v267
        %v269 = vpop.xlane.xlu0 %268
        %v270 = vrot.slane %v269, 4
        %v271 = vadd.f32 %v269, %v270
        %v272 = vrot.slane %v271, 2
        %v273 = vadd.f32 %v271, %v272
        %v274 = vrot.slane %v273, 1
        %v275 = vadd.f32 %v273, %v274
        %s276 = vtos %v275
        %v277 = vlaneseq
        %v278 = vshrl.u32 %v277, 7
        %vm279 = vcmp.eq.s32.totalorder %v278, 0
        %v280 = vstv %s265
        %v281 = vstv %s276
        %v282 = vsel %vm279, %v280, %v281
        %283 = vst [vmem:[%s219] sm:$0xff] %v282
        %s284 = sand.u32 %s100, 1
        %s285 = scalar_lea.sflag [#allocation4], %s284
        %s286 = sand.u32 %s100, 1
        %s287 = smul.addr %s286, 8
        %s288 = scalar_lea.vmem [#allocation7], %s287
        // Predicated region
        $region37: #{tpu_custom_call.1} parent=27 // pred_check
          %p289 = pneg %p110
        $region38: #{tpu_custom_call.1} parent=27 // pred_check_branch
          %291 = sbr.rel (%p289) target = $region40
        $region39: #{tpu_custom_call.1} parent=27 // pred_region
          %293 = vsyncadd %s285, 0
          %s294 = sadd.s32 %s27, %s26
          %s295 = smul.addr %s294, 8
          %s296 = scalar_lea.hbm %s2, %s295
          %s298 = sshll.u32 %s288, 4
          %s299 = int_to_ptr.vmem [resolvable:$true] %s298
          %s300 = sshll.u32 %s296, 4
          %s301 = int_to_ptr.hbm [resolvable:$true] %s300
          %303 = dma.vmem_to_hbm [thread:$0]  %s299, 128, %s301, %s285
        $region40: #{tpu_custom_call.1} parent=27 // pred_fallthru
          _
      $region28: #{tpu_custom_call.1} parent=5 // pred_fallthru
        _
      %p304 = scmp.le.s32.totalorder 2, %s17
      // Predicated region
      $region41: #{tpu_custom_call.1} parent=5 // pred_check
        %p305 = pneg %p304
      $region42: #{tpu_custom_call.1} parent=5 // pred_check_branch
        %307 = sbr.rel (%p305) target = $region44
      $region43: #{tpu_custom_call.1} parent=5 // pred_region
        %s308 = ssub.s32 %s17, 2
        // Predicated region
        $region45: #{tpu_custom_call.1} parent=43 // pred_check
          %p309 = pneg %p116
        $region46: #{tpu_custom_call.1} parent=43 // pred_check_branch
          %311 = sbr.rel (%p309) target = $region48
        $region47: #{tpu_custom_call.1} parent=43 // pred_region
          %s312 = sand.u32 %s101, 1
          %s313 = scalar_lea.sflag [#allocation4], %s312
          %s314 = sand.u32 %s101, 1
          %s315 = smul.addr %s314, 8
          %s316 = scalar_lea.vmem [#allocation7], %s315
          %318 = dma.done %s313, 128
        $region48: #{tpu_custom_call.1} parent=43 // pred_fallthru
          _
      $region44: #{tpu_custom_call.1} parent=5 // pred_fallthru
        _
    $region6: #{tpu_custom_call.1} parent=1 // loop_footer
      %s21 = sadd.s32 1, %s17
    $region7: #{tpu_custom_call.1} parent=1 // loop_footer_branch
      %16 = sbr.rel target = $region3
    $region8: #{tpu_custom_call.1} parent=1 // loop_exit
      _
    %319 = vsyncpa [#allocation3], 1
    %s320 = scalar_lea.sflag [#allocation3], 1
    %321 = vsyncpa %s320, 1
    %322 = vsyncpa [#allocation6], 1
    %s323 = scalar_lea.sflag [#allocation6], 1
    %324 = vsyncpa %s323, 1
    %325 = vsyncpa [#allocation4], 1
    %s326 = scalar_lea.sflag [#allocation4], 1
    %327 = vsyncpa %s326, 1

</llo_original>
